<compile_context>
chip_gen: v7x
topology: tpu7x:2x2x1
jax: 0.10.0
libtpu: 0.0.40
codegen_flags: <defaults>
</compile_context>

<pallas_src>
import functools

import jax
import jax.numpy as jnp
from jax.experimental import pallas as pl
from jax.experimental.pallas import tpu as pltpu


def _round_up(x, m):
    return ((x + m - 1) // m) * m


def _round_down(x, m):
    return (x // m) * m


def _vmem_capacity_bytes():
    """Physical VMEM per TensorCore; conservative fallback if query fails."""
    try:
        cap = int(pltpu.get_tpu_info().vmem_capacity_bytes)
        if cap > 0:
            return cap
    except Exception:
        pass
    return 64 << 20   # v7x per-core value; safe lower bound everywhere


def _choose_tiling(batch, fd, itemsize, vmem_cap, target_tile_bytes=None):
    """Pick (chunks per tile R, rows per chunk C); one grid step = R*C rows."""
    fd_pad = _round_up(max(fd, 1), 128)

    # C: rows per inner-loop chunk == lane width of the output slab.  Multiple
    # of 128 so output stores are unmasked; ~256 KiB of f32 working set.
    c = (256 << 10) // (fd_pad * 4)
    c = max(128, _round_down(c, 128))
    c = min(c, 1024)
    c = min(c, max(128, _round_up(max(batch, 1), 128)))

    # Generation-aware tile size: big HBM/VMEM chips get bigger tiles.
    if target_tile_bytes is None:
        target_tile_bytes = (16 << 20) if vmem_cap >= (96 << 20) else (8 << 20)

    # R: chunks per grid step, sized so one (lane-padded) input tile ~= target.
    r = target_tile_bytes // max(c * fd_pad * itemsize, 1)
    r = max(1, min(int(r), 128))

    # Keep >= 2 grid steps when the batch permits (2 TCs on v7x / megacore).
    half = _round_up(pl.cdiv(max(batch, 1), 2), c)
    r = max(1, min(r, half // c))
    return r, c


def _make_fm_kernel(num_fields, embed_dim, chunks, chunk_rows):
    F, D, R, C = num_fields, embed_dim, chunks, chunk_rows
    FD = F * D

    def kernel(fold_ref, x_ref, o_ref):
        # x_ref:    (R*C, FD) VMEM tile (fields folded into lanes).
        # fold_ref: (FD, D)   block-identity fold matrix (grid-resident).
        # o_ref:    (1, R, C) lane-dense output slab (one scalar per row).
        def body(r, carry):
            row0 = pl.multiple_of(r * C, C)
            xr = x_ref[pl.ds(row0, C), :].astype(jnp.float32)          # (C, FD)

            # Field fold on the MXU: s[c, d] = sum_f x[c, f*D + d].
            fold = fold_ref[...]                                       # (FD, D)
            s = jax.lax.dot_general(
                xr, fold, (((1,), (0,)), ((), ())),
                preferred_element_type=jnp.float32)                    # (C, D)

            # Lane reductions on the MXU via all-ones NT matmuls: the result
            # comes out with batch rows on the lane axis -> lane-dense store,
            # no XLU rotate/reduce/transpose anywhere.
            ones_fd = jnp.ones((8, FD), jnp.float32)
            ones_d = jnp.ones((8, D), jnp.float32)
            sum_of_square = jax.lax.dot_general(
                ones_fd, xr * xr, (((1,), (1,)), ((), ())),
                preferred_element_type=jnp.float32)                    # (8, C)
            square_of_sum = jax.lax.dot_general(
                ones_d, s * s, (((1,), (1,)), ((), ())),
                preferred_element_type=jnp.float32)                    # (8, C)

            cross = 0.5 * (square_of_sum[0:1, :] - sum_of_square[0:1, :])
            o_ref[0, pl.ds(r, 1), :] = cross.astype(o_ref.dtype)       # (1, C)
            return carry

        jax.lax.fori_loop(0, R, body, 0, unroll=(2 if R > 1 else 1))

    return kernel


@functools.partial(jax.jit, static_argnames=("target_tile_bytes",))
def fm_forward(x, *, target_tile_bytes=None):
    """FM cross term. x: (B, F, D) -> (B, 1) in x.dtype (f32 accumulation)."""
    B, F, D = x.shape
    FD = F * D
    itemsize = jnp.dtype(x.dtype).itemsize
    vmem_cap = _vmem_capacity_bytes()

    r, c = _choose_tiling(B, FD, itemsize, vmem_cap, target_tile_bytes)
    tb = r * c                                   # batch rows per grid step
    num_tiles = pl.cdiv(B, tb)

    # Fold fields into the lane axis; collapsing contiguous minor dims is free.
    x2 = x.reshape(B, FD)
    # No host-side jnp.pad: the partial last block's DMA is clamped by Pallas;
    # out-of-range rows compute garbage that the final [:B] slice discards.

    # Block-identity fold matrix (F stacked DxD identities), tiny constant.
    fold = jnp.tile(jnp.eye(D, dtype=jnp.float32), (F, 1))          # (FD, D)

    fd_pad = _round_up(FD, 128)
    in_tile_bytes = tb * fd_pad * itemsize       # lane-padded VMEM footprint
    vmem_limit = 2 * in_tile_bytes + (8 << 20)   # dbl-buffered input + slack
    vmem_limit = int(min(max(vmem_limit, 32 << 20),
                         max(32 << 20, (vmem_cap * 3) // 4)))

    out3 = pl.pallas_call(
        _make_fm_kernel(F, D, r, c),
        out_shape=jax.ShapeDtypeStruct((num_tiles, r, c), x.dtype),
        grid_spec=pltpu.PrefetchScalarGridSpec(
            num_scalar_prefetch=0,
            grid=(num_tiles,),
            in_specs=[
                pl.BlockSpec((FD, D), lambda i: (0, 0)),    # fold (resident)
                pl.BlockSpec((tb, FD), lambda i: (i, 0)),   # x tile
            ],
            out_specs=pl.BlockSpec((1, r, c), lambda i: (i, 0, 0)),
        ),
        compiler_params=pltpu.CompilerParams(
            dimension_semantics=("parallel",),
            vmem_limit_bytes=vmem_limit,
        ),
    )(fold, x2)

    # (num_tiles, r, c) row-major flatten == (padded) batch order.
    return out3.reshape(num_tiles * tb, 1)[:B]


def fm_reference(x):
    """Pure-JAX reference mirroring the PyTorch module exactly."""
    square_of_sum = jnp.sum(x, axis=1) ** 2
    sum_of_square = jnp.sum(x ** 2, axis=1)
    cross_term = square_of_sum - sum_of_square
    return 0.5 * jnp.sum(cross_term, axis=1, keepdims=True)


if __name__ == "__main__":
    # Case 1: f32, nicely shaped (B=16, F=4, D=32 -> F*D = 128 lanes).
    key = jax.random.PRNGKey(0)
    B, F, D = 16, 4, 32
    x = jax.random.normal(key, (B, F, D), dtype=jnp.float32)
    out = jax.block_until_ready(fm_forward(x))
    ref = fm_reference(x)
    assert out.shape == (B, 1), out.shape
    assert jnp.allclose(out, ref, atol=1e-4, rtol=1e-4), (
        f"max abs err = {jnp.max(jnp.abs(out - ref))}")

    # Case 2: bf16 input + ragged batch (partial-last-block path, no pad).
    B2, F2, D2 = 13, 3, 16
    x2 = jax.random.normal(jax.random.PRNGKey(1), (B2, F2, D2), dtype=jnp.bfloat16)
    out2 = jax.block_until_ready(fm_forward(x2))
    ref2 = fm_reference(x2.astype(jnp.float32))
    assert out2.shape == (B2, 1), out2.shape
    assert jnp.allclose(out2.astype(jnp.float32), ref2, atol=0.5, rtol=5e-2), (
        f"max abs err = {jnp.max(jnp.abs(out2.astype(jnp.float32) - ref2))}")

    print("KERNEL_OK")
</pallas_src>

<mosaic_0001>
module attributes {stable_mosaic.version = 11 : i64} {
  func.func @kernel(%arg0: i32, %arg1: memref<128x32xf32, #tpu.memory_space<vmem>>, %arg2: memref<128x128xf32, #tpu.memory_space<vmem>>, %arg3: memref<1x1x128xf32, #tpu.memory_space<vmem>>) attributes {dimension_semantics = [#tpu.dimension_semantics<parallel>], iteration_bounds = array<i64: 1>, scalar_prefetch = 0 : i64, scratch_operands = 0 : i64, tpu.core_type = #tpu.core_type<tc>, window_params = [{pipeline_mode = #tpu.pipeline_mode<synchronous>, transform_indices = @transform_0, window_bounds = array<i64: 128, 32>}, {transform_indices = @transform_1, window_bounds = array<i64: 128, 128>}, {transform_indices = @transform_2, window_bounds = array<i64: 1, 1, 128>}]} {
    %c0_i32 = arith.constant 0 : i32
    %c128_i32 = arith.constant 128 : i32
    %0 = arith.muli %c0_i32, %c128_i32 : i32
    %1 = tpu.assume_multiple %0, 128 : i32
    %2 = arith.index_cast %1 : i32 to index
    %c0 = arith.constant 0 : index
    %3 = vector.load %arg2[%2, %c0] : memref<128x128xf32, #tpu.memory_space<vmem>>, vector<128x128xf32>
    %c0_0 = arith.constant 0 : index
    %c0_1 = arith.constant 0 : index
    %4 = vector.load %arg1[%c0_0, %c0_1] : memref<128x32xf32, #tpu.memory_space<vmem>>, vector<128x32xf32>
    %cst = arith.constant dense<0.000000e+00> : vector<128x32xf32>
    %5 = tpu.matmul %3, %4, %cst {dimension_numbers = #tpu.dot_dimension_numbers<[1], [0], [0], [1], [0, 0, 1, 1], [], []>} : vector<128x128xf32>, vector<128x32xf32>, vector<128x32xf32> -> vector<128x32xf32>
    %cst_2 = arith.constant 1.000000e+00 : f32
    %6 = vector.broadcast %cst_2 : f32 to vector<8x128xf32>
    %cst_3 = arith.constant 1.000000e+00 : f32
    %7 = vector.broadcast %cst_3 : f32 to vector<8x32xf32>
    %8 = arith.mulf %3, %3 : vector<128x128xf32>
    %cst_4 = arith.constant dense<0.000000e+00> : vector<8x128xf32>
    %9 = tpu.matmul %6, %8, %cst_4 {dimension_numbers = #tpu.dot_dimension_numbers<[1], [1], [0], [0], [0, 0, 1, 0], [], []>} : vector<8x128xf32>, vector<128x128xf32>, vector<8x128xf32> -> vector<8x128xf32>
    %10 = arith.mulf %5, %5 : vector<128x32xf32>
    %cst_5 = arith.constant dense<0.000000e+00> : vector<8x128xf32>
    %11 = tpu.matmul %7, %10, %cst_5 {dimension_numbers = #tpu.dot_dimension_numbers<[1], [1], [0], [0], [0, 0, 1, 0], [], []>} : vector<8x32xf32>, vector<128x32xf32>, vector<8x128xf32> -> vector<8x128xf32>
    %12 = vector.extract_strided_slice %11 {offsets = [0, 0], sizes = [1, 128], strides = [1, 1]} : vector<8x128xf32> to vector<1x128xf32>
    %13 = vector.extract_strided_slice %9 {offsets = [0, 0], sizes = [1, 128], strides = [1, 1]} : vector<8x128xf32> to vector<1x128xf32>
    %14 = arith.subf %12, %13 : vector<1x128xf32>
    %cst_6 = arith.constant 5.000000e-01 : f32
    %15 = vector.broadcast %cst_6 : f32 to vector<1x128xf32>
    %16 = arith.mulf %15, %14 : vector<1x128xf32>
    %c0_7 = arith.constant 0 : index
    %17 = arith.index_cast %c0_i32 : i32 to index
    %c0_8 = arith.constant 0 : index
    %18 = vector.load %arg3[%c0_7, %17, %c0_8] : memref<1x1x128xf32, #tpu.memory_space<vmem>>, vector<1x1x128xf32>
    %19 = vector.shape_cast %18 : vector<1x1x128xf32> to vector<1x128xf32>
    %20 = vector.shape_cast %16 : vector<1x128xf32> to vector<1x1x128xf32>
    tpu.vector_store %arg3[%c0_7, %17, %c0_8], %20 {strides = array<i32>} : memref<1x1x128xf32, #tpu.memory_space<vmem>>, vector<1x1x128xf32>,
    %c1_i32 = arith.constant 1 : i32
    return
  }
  func.func @transform_0(%arg0: i32) -> (i32, i32) {
    %c0_i32 = arith.constant 0 : i32
    %c0_i32_0 = arith.constant 0 : i32
    %c0_i32_1 = arith.constant 0 : i32
    return %c0_i32, %c0_i32_0 : i32, i32
  }
  func.func @transform_1(%arg0: i32) -> (i32, i32) {
    %c0_i32 = arith.constant 0 : i32
    %c0_i32_0 = arith.constant 0 : i32
    return %arg0, %c0_i32 : i32, i32
  }
  func.func @transform_2(%arg0: i32) -> (i32, i32, i32) {
    %c0_i32 = arith.constant 0 : i32
    %c0_i32_0 = arith.constant 0 : i32
    %c0_i32_1 = arith.constant 0 : i32
    return %arg0, %c0_i32, %c0_i32_0 : i32, i32, i32
  }
}

</mosaic_0001>

<llo_original>
// kernel: fm_forward.1
$region0: #{fm_forward.1}
  #allocation0 [shape = 'u32[]', space=smem, size = 0x4, offset = 0x4, fixed_abs, tag = 'smem constant byte address 0x4 - core index']
  #allocation1 [shape = 'u32[144,128]{1,0:T(1,128)}', space=vmem, size = 0x12000, scoped, tag = 'internal scratch']
  %s0 = inlined_call_operand.vmem [shape: f32[128,32], index: 0, kind: input, shape index: {}]
  %s1 = inlined_call_operand.vmem [shape: f32[16,128], index: 1, kind: input, shape index: {}]
  %s2 = inlined_call_operand.vmem [shape: f32[1,1,128], index: 2, kind: output, shape index: {}]
  %s3 = sld [smem:[#allocation0]]
  $region18: #{fm_forward.1} parent=0
    _
  %s5 = ssub.s32 1, %s3
  %s6 = scalar_select 0, %s5, %s3
  // Predicated region
  $region2: #{fm_forward.1} parent=0 // pred_check
    _
  $region3: #{fm_forward.1} parent=0 // pred_check_branch
    %8 = sbr.rel (0) target = $region5
  $region4: #{fm_forward.1} parent=0 // pred_region
    _
  $region5: #{fm_forward.1} parent=0 // pred_fallthru
    _
  // Predicated region
  $region6: #{fm_forward.1} parent=0 // pred_check
    _
  $region7: #{fm_forward.1} parent=0 // pred_check_branch
    %10 = sbr.rel (0) target = $region9
  $region8: #{fm_forward.1} parent=0 // pred_region
    _
  $region9: #{fm_forward.1} parent=0 // pred_fallthru
    _
  %v11 = vld [vmem:[%s1] sm:$0xff]
  %v12 = vld [vmem:[%s1 + $0x8] sm:$0xff]
  %v13 = vld [vmem:[%s1 + $0x10] sm:$0xff]
  %v14 = vld [vmem:[%s1 + $0x18] sm:$0xff]
  %v15 = vld [vmem:[%s1 + $0x20] sm:$0xff]
  %v16 = vld [vmem:[%s1 + $0x28] sm:$0xff]
  %v17 = vld [vmem:[%s1 + $0x30] sm:$0xff]
  %v18 = vld [vmem:[%s1 + $0x38] sm:$0xff]
  %v19 = vld [vmem:[%s1 + $0x40] sm:$0xff]
  %v20 = vld [vmem:[%s1 + $0x48] sm:$0xff]
  %v21 = vld [vmem:[%s1 + $0x50] sm:$0xff]
  %v22 = vld [vmem:[%s1 + $0x58] sm:$0xff]
  %v23 = vld [vmem:[%s1 + $0x60] sm:$0xff]
  %v24 = vld [vmem:[%s1 + $0x68] sm:$0xff]
  %v25 = vld [vmem:[%s1 + $0x70] sm:$0xff]
  %v26 = vld [vmem:[%s1 + $0x78] sm:$0xff]
  %v27 = vld [vmem:[%s0] sm:$0xff]
  %v28 = vld [vmem:[%s0 + $0x8] sm:$0xff]
  %v29 = vld [vmem:[%s0 + $0x10] sm:$0xff]
  %v30 = vld [vmem:[%s0 + $0x18] sm:$0xff]
  %v31 = vld [vmem:[%s0 + $0x20] sm:$0xff]
  %v32 = vld [vmem:[%s0 + $0x28] sm:$0xff]
  %v33 = vld [vmem:[%s0 + $0x30] sm:$0xff]
  %v34 = vld [vmem:[%s0 + $0x38] sm:$0xff]
  %v35 = vld [vmem:[%s0 + $0x40] sm:$0xff]
  %v36 = vld [vmem:[%s0 + $0x48] sm:$0xff]
  %v37 = vld [vmem:[%s0 + $0x50] sm:$0xff]
  %v38 = vld [vmem:[%s0 + $0x58] sm:$0xff]
  %v39 = vld [vmem:[%s0 + $0x60] sm:$0xff]
  %v40 = vld [vmem:[%s0 + $0x68] sm:$0xff]
  %v41 = vld [vmem:[%s0 + $0x70] sm:$0xff]
  %v42 = vld [vmem:[%s0 + $0x78] sm:$0xff]
  %43 = vmatprep.subr.mxu0 0.0
  %44 = vmatpush1.msra.mxu0 %v27
  %45 = vmatprep.subr.mxu0 0.0
  %46 = vmatpush1.msra.mxu0 %v28
  %47 = vmatprep.subr.mxu0 0.0
  %48 = vmatpush1.msra.mxu0 %v29
  %49 = vmatprep.subr.mxu0 0.0
  %50 = vmatpush1.msra.mxu0 %v30
  %51 = vmatprep.subr.mxu0 0.0
  %52 = vmatpush1.msra.mxu0 %v31
  %53 = vmatprep.subr.mxu0 0.0
  %54 = vmatpush1.msra.mxu0 %v32
  %55 = vmatprep.subr.mxu0 0.0
  %56 = vmatpush1.msra.mxu0 %v33
  %57 = vmatprep.subr.mxu0 0.0
  %58 = vmatpush1.msra.mxu0 %v34
  %59 = vmatprep.subr.mxu0 0.0
  %60 = vmatpush1.msra.mxu0 %v35
  %61 = vmatprep.subr.mxu0 0.0
  %62 = vmatpush1.msra.mxu0 %v36
  %63 = vmatprep.subr.mxu0 0.0
  %64 = vmatpush1.msra.mxu0 %v37
  %65 = vmatprep.subr.mxu0 0.0
  %66 = vmatpush1.msra.mxu0 %v38
  %67 = vmatprep.subr.mxu0 0.0
  %68 = vmatpush1.msra.mxu0 %v39
  %69 = vmatprep.subr.mxu0 0.0
  %70 = vmatpush1.msra.mxu0 %v40
  %71 = vmatprep.subr.mxu0 0.0
  %72 = vmatpush1.msra.mxu0 %v41
  %73 = vmatprep.subr.mxu0 0.0
  %74 = vmatpush1.msra.mxu0 %v42
  %75 = vmatprep.subr.mxu0 0.0
  %76 = vmatpush1.msra.mxu0 0.0
  %77 = vmatprep.subr.mxu0 0.0
  %78 = vmatpush1.msra.mxu0 0.0
  %79 = vmatprep.subr.mxu0 0.0
  %80 = vmatpush1.msra.mxu0 0.0
  %81 = vmatprep.subr.mxu0 0.0
  %82 = vmatpush1.msra.mxu0 0.0
  %83 = vmatprep.subr.mxu0 0.0
  %84 = vmatpush1.msra.mxu0 0.0
  %85 = vmatprep.subr.mxu0 0.0
  %86 = vmatpush1.msra.mxu0 0.0
  %87 = vmatprep.subr.mxu0 0.0
  %88 = vmatpush1.msra.mxu0 0.0
  %89 = vmatprep.subr.mxu0 0.0
  %90 = vmatpush1.msra.mxu0 0.0
  %91 = vmatprep.subr.mxu0 0.0
  %92 = vmatpush1.msra.mxu0 0.0
  %93 = vmatprep.subr.mxu0 0.0
  %94 = vmatpush1.msra.mxu0 0.0
  %95 = vmatprep.subr.mxu0 0.0
  %96 = vmatpush1.msra.mxu0 0.0
  %97 = vmatprep.subr.mxu0 0.0
  %98 = vmatpush1.msra.mxu0 0.0
  %99 = vmatprep.subr.mxu0 0.0
  %100 = vmatpush1.msra.mxu0 0.0
  %101 = vmatprep.subr.mxu0 0.0
  %102 = vmatpush1.msra.mxu0 0.0
  %103 = vmatprep.subr.mxu0 0.0
  %104 = vmatpush1.msra.mxu0 0.0
  %105 = vmatprep.subr.mxu0 0.0
  %106 = vmatpush1.msra.mxu0 0.0
  %107 = vmatprep.mubr.f32.mxu0 0.0
  %108 = vmatmul.mubr.f32.gmra.mrb[0].mxu0 %v11
  %v109 = vpop.f32.mrb[0].mxu0
  %v110 = vadd.f32 0.0, %v109
  %v111 = vpop.f32.mrb[0].mxu0
  %112 = vmatprep.mubr.f32.mxu0 0.0
  %113 = vmatmul.mubr.f32.gmra.mrb[0].mxu0 %v12
  %v114 = vpop.f32.mrb[0].mxu0
  %v115 = vadd.f32 0.0, %v114
  %v116 = vpop.f32.mrb[0].mxu0
  %117 = vmatprep.mubr.f32.mxu0 0.0
  %118 = vmatmul.mubr.f32.gmra.mrb[0].mxu0 %v13
  %v119 = vpop.f32.mrb[0].mxu0
  %v120 = vadd.f32 0.0, %v119
  %v121 = vpop.f32.mrb[0].mxu0
  %122 = vmatprep.mubr.f32.mxu0 0.0
  %123 = vmatmul.mubr.f32.gmra.mrb[0].mxu0 %v14
  %v124 = vpop.f32.mrb[0].mxu0
  %v125 = vadd.f32 0.0, %v124
  %v126 = vpop.f32.mrb[0].mxu0
  %127 = vmatprep.mubr.f32.mxu0 0.0
  %128 = vmatmul.mubr.f32.gmra.mrb[0].mxu0 %v15
  %v129 = vpop.f32.mrb[0].mxu0
  %v130 = vadd.f32 0.0, %v129
  %v131 = vpop.f32.mrb[0].mxu0
  %132 = vmatprep.mubr.f32.mxu0 0.0
  %133 = vmatmul.mubr.f32.gmra.mrb[0].mxu0 %v16
  %v134 = vpop.f32.mrb[0].mxu0
  %v135 = vadd.f32 0.0, %v134
  %v136 = vpop.f32.mrb[0].mxu0
  %137 = vmatprep.mubr.f32.mxu0 0.0
  %138 = vmatmul.mubr.f32.gmra.mrb[0].mxu0 %v17
  %v139 = vpop.f32.mrb[0].mxu0
  %v140 = vadd.f32 0.0, %v139
  %v141 = vpop.f32.mrb[0].mxu0
  %142 = vmatprep.mubr.f32.mxu0 0.0
  %143 = vmatmul.mubr.f32.gmra.mrb[0].mxu0 %v18
  %v144 = vpop.f32.mrb[0].mxu0
  %v145 = vadd.f32 0.0, %v144
  %v146 = vpop.f32.mrb[0].mxu0
  %147 = vmatprep.mubr.f32.mxu0 0.0
  %148 = vmatmul.mubr.f32.gmra.mrb[0].mxu0 %v19
  %v149 = vpop.f32.mrb[0].mxu0
  %v150 = vadd.f32 0.0, %v149
  %v151 = vpop.f32.mrb[0].mxu0
  %152 = vmatprep.mubr.f32.mxu0 0.0
  %153 = vmatmul.mubr.f32.gmra.mrb[0].mxu0 %v20
  %v154 = vpop.f32.mrb[0].mxu0
  %v155 = vadd.f32 0.0, %v154
  %v156 = vpop.f32.mrb[0].mxu0
  %157 = vmatprep.mubr.f32.mxu0 0.0
  %158 = vmatmul.mubr.f32.gmra.mrb[0].mxu0 %v21
  %v159 = vpop.f32.mrb[0].mxu0
  %v160 = vadd.f32 0.0, %v159
  %v161 = vpop.f32.mrb[0].mxu0
  %162 = vmatprep.mubr.f32.mxu0 0.0
  %163 = vmatmul.mubr.f32.gmra.mrb[0].mxu0 %v22
  %v164 = vpop.f32.mrb[0].mxu0
  %v165 = vadd.f32 0.0, %v164
  %v166 = vpop.f32.mrb[0].mxu0
  %167 = vmatprep.mubr.f32.mxu0 0.0
  %168 = vmatmul.mubr.f32.gmra.mrb[0].mxu0 %v23
  %v169 = vpop.f32.mrb[0].mxu0
  %v170 = vadd.f32 0.0, %v169
  %v171 = vpop.f32.mrb[0].mxu0
  %172 = vmatprep.mubr.f32.mxu0 0.0
  %173 = vmatmul.mubr.f32.gmra.mrb[0].mxu0 %v24
  %v174 = vpop.f32.mrb[0].mxu0
  %v175 = vadd.f32 0.0, %v174
  %v176 = vpop.f32.mrb[0].mxu0
  %177 = vmatprep.mubr.f32.mxu0 0.0
  %178 = vmatmul.mubr.f32.gmra.mrb[0].mxu0 %v25
  %v179 = vpop.f32.mrb[0].mxu0
  %v180 = vadd.f32 0.0, %v179
  %v181 = vpop.f32.mrb[0].mxu0
  %182 = vmatprep.mubr.f32.mxu0 0.0
  %183 = vmatmul.mubr.f32.gmra.mrb[0].mxu0 %v26
  %v184 = vpop.f32.mrb[0].mxu0
  %v185 = vadd.f32 0.0, %v184
  %v186 = vpop.f32.mrb[0].mxu0
  %187 = vdwg.mxu0
  %v188 = vmul.f32 %v11, %v11
  %v189 = vmul.f32 %v12, %v12
  %v190 = vmul.f32 %v13, %v13
  %v191 = vmul.f32 %v14, %v14
  %v192 = vmul.f32 %v15, %v15
  %v193 = vmul.f32 %v16, %v16
  %v194 = vmul.f32 %v17, %v17
  %v195 = vmul.f32 %v18, %v18
  %v196 = vmul.f32 %v19, %v19
  %v197 = vmul.f32 %v20, %v20
  %v198 = vmul.f32 %v21, %v21
  %v199 = vmul.f32 %v22, %v22
  %v200 = vmul.f32 %v23, %v23
  %v201 = vmul.f32 %v24, %v24
  %v202 = vmul.f32 %v25, %v25
  %v203 = vmul.f32 %v26, %v26
  %204 = vmatprep.subr.mxu0 0.0
  %205 = vmatpush1.xpose.msra.mxu0 %v188
  %206 = vmatprep.subr.mxu0 0.0
  %207 = vmatpush1.xpose.msra.mxu0 %v189
  %208 = vmatprep.subr.mxu0 0.0
  %209 = vmatpush1.xpose.msra.mxu0 %v190
  %210 = vmatprep.subr.mxu0 0.0
  %211 = vmatpush1.xpose.msra.mxu0 %v191
  %212 = vmatprep.subr.mxu0 0.0
  %213 = vmatpush1.xpose.msra.mxu0 %v192
  %214 = vmatprep.subr.mxu0 0.0
  %215 = vmatpush1.xpose.msra.mxu0 %v193
  %216 = vmatprep.subr.mxu0 0.0
  %217 = vmatpush1.xpose.msra.mxu0 %v194
  %218 = vmatprep.subr.mxu0 0.0
  %219 = vmatpush1.xpose.msra.mxu0 %v195
  %220 = vmatprep.subr.mxu0 0.0
  %221 = vmatpush1.xpose.msra.mxu0 %v196
  %222 = vmatprep.subr.mxu0 0.0
  %223 = vmatpush1.xpose.msra.mxu0 %v197
  %224 = vmatprep.subr.mxu0 0.0
  %225 = vmatpush1.xpose.msra.mxu0 %v198
  %226 = vmatprep.subr.mxu0 0.0
  %227 = vmatpush1.xpose.msra.mxu0 %v199
  %228 = vmatprep.subr.mxu0 0.0
  %229 = vmatpush1.xpose.msra.mxu0 %v200
  %230 = vmatprep.subr.mxu0 0.0
  %231 = vmatpush1.xpose.msra.mxu0 %v201
  %232 = vmatprep.subr.mxu0 0.0
  %233 = vmatpush1.xpose.msra.mxu0 %v202
  %234 = vmatprep.subr.mxu0 0.0
  %235 = vmatpush1.xpose.msra.mxu0 %v203
  %236 = vmatprep.subr.mxu0 0.0
  %237 = vmatpush1.xpose.msra.mxu0 0.0
  %238 = vmatprep.subr.mxu0 0.0
  %239 = vmatpush1.xpose.msra.mxu0 0.0
  %240 = vmatprep.subr.mxu0 0.0
  %241 = vmatpush1.xpose.msra.mxu0 0.0
  %242 = vmatprep.subr.mxu0 0.0
  %243 = vmatpush1.xpose.msra.mxu0 0.0
  %244 = vmatprep.subr.mxu0 0.0
  %245 = vmatpush1.xpose.msra.mxu0 0.0
  %246 = vmatprep.subr.mxu0 0.0
  %247 = vmatpush1.xpose.msra.mxu0 0.0
  %248 = vmatprep.subr.mxu0 0.0
  %249 = vmatpush1.xpose.msra.mxu0 0.0
  %250 = vmatprep.subr.mxu0 0.0
  %251 = vmatpush1.xpose.msra.mxu0 0.0
  %252 = vmatprep.subr.mxu0 0.0
  %253 = vmatpush1.xpose.msra.mxu0 0.0
  %254 = vmatprep.subr.mxu0 0.0
  %255 = vmatpush1.xpose.msra.mxu0 0.0
  %256 = vmatprep.subr.mxu0 0.0
  %257 = vmatpush1.xpose.msra.mxu0 0.0
  %258 = vmatprep.subr.mxu0 0.0
  %259 = vmatpush1.xpose.msra.mxu0 0.0
  %260 = vmatprep.subr.mxu0 0.0
  %261 = vmatpush1.xpose.msra.mxu0 0.0
  %262 = vmatprep.subr.mxu0 0.0
  %263 = vmatpush1.xpose.msra.mxu0 0.0
  %264 = vmatprep.subr.mxu0 0.0
  %265 = vmatpush1.xpose.msra.mxu0 0.0
  %266 = vmatprep.subr.mxu0 0.0
  %267 = vmatpush1.xpose.msra.mxu0 0.0
  %268 = vmatprep.mubr.f32.mxu0 0.0
  %269 = vmatmul.mubr.f32.gmra.mrb[0].mxu0 1.0
  %v270 = vpop.f32.mrb[0].mxu0
  %v271 = vadd.f32 0.0, %v270
  %v272 = vpop.f32.mrb[0].mxu0
  %273 = vdwg.mxu0
  %v274 = vmul.f32 %v110, %v110
  %v275 = vmul.f32 %v115, %v115
  %v276 = vmul.f32 %v120, %v120
  %v277 = vmul.f32 %v125, %v125
  %v278 = vmul.f32 %v130, %v130
  %v279 = vmul.f32 %v135, %v135
  %v280 = vmul.f32 %v140, %v140
  %v281 = vmul.f32 %v145, %v145
  %v282 = vmul.f32 %v150, %v150
  %v283 = vmul.f32 %v155, %v155
  %v284 = vmul.f32 %v160, %v160
  %v285 = vmul.f32 %v165, %v165
  %v286 = vmul.f32 %v170, %v170
  %v287 = vmul.f32 %v175, %v175
  %v288 = vmul.f32 %v180, %v180
  %v289 = vmul.f32 %v185, %v185
  %vm290 = vcmask 261120
  %v292 = vsel %vm290, 1.0, 0
  %v295 = vsel %vm290, %v274, 0
  %v298 = vsel %vm290, %v275, 0
  %v301 = vsel %vm290, %v276, 0
  %v304 = vsel %vm290, %v277, 0
  %v307 = vsel %vm290, %v278, 0
  %v310 = vsel %vm290, %v279, 0
  %v313 = vsel %vm290, %v280, 0
  %v316 = vsel %vm290, %v281, 0
  %v319 = vsel %vm290, %v282, 0
  %v322 = vsel %vm290, %v283, 0
  %v325 = vsel %vm290, %v284, 0
  %v328 = vsel %vm290, %v285, 0
  %v331 = vsel %vm290, %v286, 0
  %v334 = vsel %vm290, %v287, 0
  %v337 = vsel %vm290, %v288, 0
  %v340 = vsel %vm290, %v289, 0
  %342 = vmatprep.subr.mxu0 0.0
  %343 = vmatpush1.xpose.msra.mxu0 %v295
  %344 = vmatprep.subr.mxu0 0.0
  %345 = vmatpush1.xpose.msra.mxu0 %v298
  %346 = vmatprep.subr.mxu0 0.0
  %347 = vmatpush1.xpose.msra.mxu0 %v301
  %348 = vmatprep.subr.mxu0 0.0
  %349 = vmatpush1.xpose.msra.mxu0 %v304
  %350 = vmatprep.subr.mxu0 0.0
  %351 = vmatpush1.xpose.msra.mxu0 %v307
  %352 = vmatprep.subr.mxu0 0.0
  %353 = vmatpush1.xpose.msra.mxu0 %v310
  %354 = vmatprep.subr.mxu0 0.0
  %355 = vmatpush1.xpose.msra.mxu0 %v313
  %356 = vmatprep.subr.mxu0 0.0
  %357 = vmatpush1.xpose.msra.mxu0 %v316
  %358 = vmatprep.subr.mxu0 0.0
  %359 = vmatpush1.xpose.msra.mxu0 %v319
  %360 = vmatprep.subr.mxu0 0.0
  %361 = vmatpush1.xpose.msra.mxu0 %v322
  %362 = vmatprep.subr.mxu0 0.0
  %363 = vmatpush1.xpose.msra.mxu0 %v325
  %364 = vmatprep.subr.mxu0 0.0
  %365 = vmatpush1.xpose.msra.mxu0 %v328
  %366 = vmatprep.subr.mxu0 0.0
  %367 = vmatpush1.xpose.msra.mxu0 %v331
  %368 = vmatprep.subr.mxu0 0.0
  %369 = vmatpush1.xpose.msra.mxu0 %v334
  %370 = vmatprep.subr.mxu0 0.0
  %371 = vmatpush1.xpose.msra.mxu0 %v337
  %372 = vmatprep.subr.mxu0 0.0
  %373 = vmatpush1.xpose.msra.mxu0 %v340
  %374 = vmatprep.subr.mxu0 0.0
  %375 = vmatpush1.xpose.msra.mxu0 0.0
  %376 = vmatprep.subr.mxu0 0.0
  %377 = vmatpush1.xpose.msra.mxu0 0.0
  %378 = vmatprep.subr.mxu0 0.0
  %379 = vmatpush1.xpose.msra.mxu0 0.0
  %380 = vmatprep.subr.mxu0 0.0
  %381 = vmatpush1.xpose.msra.mxu0 0.0
  %382 = vmatprep.subr.mxu0 0.0
  %383 = vmatpush1.xpose.msra.mxu0 0.0
  %384 = vmatprep.subr.mxu0 0.0
  %385 = vmatpush1.xpose.msra.mxu0 0.0
  %386 = vmatprep.subr.mxu0 0.0
  %387 = vmatpush1.xpose.msra.mxu0 0.0
  %388 = vmatprep.subr.mxu0 0.0
  %389 = vmatpush1.xpose.msra.mxu0 0.0
  %390 = vmatprep.subr.mxu0 0.0
  %391 = vmatpush1.xpose.msra.mxu0 0.0
  %392 = vmatprep.subr.mxu0 0.0
  %393 = vmatpush1.xpose.msra.mxu0 0.0
  %394 = vmatprep.subr.mxu0 0.0
  %395 = vmatpush1.xpose.msra.mxu0 0.0
  %396 = vmatprep.subr.mxu0 0.0
  %397 = vmatpush1.xpose.msra.mxu0 0.0
  %398 = vmatprep.subr.mxu0 0.0
  %399 = vmatpush1.xpose.msra.mxu0 0.0
  %400 = vmatprep.subr.mxu0 0.0
  %401 = vmatpush1.xpose.msra.mxu0 0.0
  %402 = vmatprep.subr.mxu0 0.0
  %403 = vmatpush1.xpose.msra.mxu0 0.0
  %404 = vmatprep.subr.mxu0 0.0
  %405 = vmatpush1.xpose.msra.mxu0 0.0
  %406 = vmatprep.mubr.f32.mxu0 0.0
  %407 = vmatmul.mubr.f32.gmra.mrb[0].mxu0 %v292
  %v408 = vpop.f32.mrb[0].mxu0
  %v409 = vadd.f32 0.0, %v408
  %v410 = vpop.f32.mrb[0].mxu0
  %411 = vdwg.mxu0
  %v412 = vsub.f32 %v409, %v271
  %v413 = vmul.f32 %v412, 0.5
  %414 = vst [vmem:[%s2] sm:$0x1] %v413
  // Predicated region
  $region10: #{fm_forward.1} parent=0 // pred_check
    _
  $region11: #{fm_forward.1} parent=0 // pred_check_branch
    %416 = sbr.rel (0) target = $region13
  $region12: #{fm_forward.1} parent=0 // pred_region
    _
  $region13: #{fm_forward.1} parent=0 // pred_fallthru
    _
  // Predicated region
  $region14: #{fm_forward.1} parent=0 // pred_check
    _
  $region15: #{fm_forward.1} parent=0 // pred_check_branch
    %418 = sbr.rel (0) target = $region17
  $region16: #{fm_forward.1} parent=0 // pred_region
    _
  $region17: #{fm_forward.1} parent=0 // pred_fallthru
    _

</llo_original>
